<compile_context>
chip_gen: v7x
topology: tpu7x:2x2x1
jax: 0.10.0
libtpu: 0.0.40
codegen_flags: <defaults>
</compile_context>

<pallas_src>
import jax
import jax.numpy as jnp
import numpy as np
from jax.experimental import pallas as pl
from jax.experimental.pallas import tpu as pltpu

BATCH = 8
TEXT_DIM = 32
IMAGE_DIM = 48
HIDDEN_DIM = 32
IN_LANES = 128            # padded (lane-dense) stage-1 input width
EPS = 1e-5                # torch.nn.LayerNorm default


def feature_extractor_kernel(x_ref, w64_ref, w32_ref, w128_ref, out_ref):
    H = HIDDEN_DIM
    B = BATCH
    H2 = 2 * H
    H4 = 4 * H
    inv_h = 1.0 / H

    # ---- stage 1: fused text/image Linear (block-diagonal weight) -> one MXU push
    h = jnp.dot(x_ref[...], w64_ref[0:IN_LANES, :],
                preferred_element_type=jnp.float32)                  # [B, 2H]
    h = h + w64_ref[IN_LANES + H2:IN_LANES + H2 + B, :]              # + [bt | bi]

    # ---- per-half LayerNorm + ReLU (independent sum / sum-sq reduces, E[x^2]-m^2)
    lane = jax.lax.broadcasted_iota(jnp.int32, h.shape, 1)
    is_lo = lane < H
    zero = jnp.zeros_like(h)
    hh = h * h
    s_lo = jnp.sum(jnp.where(is_lo, h, zero), axis=-1, keepdims=True)
    s_hi = jnp.sum(jnp.where(is_lo, zero, h), axis=-1, keepdims=True)
    q_lo = jnp.sum(jnp.where(is_lo, hh, zero), axis=-1, keepdims=True)
    q_hi = jnp.sum(jnp.where(is_lo, zero, hh), axis=-1, keepdims=True)
    mean = jnp.where(is_lo, s_lo, s_hi) * inv_h
    var = jnp.where(is_lo, q_lo, q_hi) * inv_h - mean * mean
    gamma = w64_ref[IN_LANES + H2 + B:IN_LANES + H2 + 2 * B, :]      # [gt | gi]
    beta = w64_ref[IN_LANES + H2 + 2 * B:IN_LANES + H2 + 3 * B, :]   # [btln | biln]
    th_ih = jnp.maximum((h - mean) * jax.lax.rsqrt(var + EPS) * gamma + beta, 0.0)

    # ---- cross attention with seq_len == 1: softmax over a length-1 axis is 1.0,
    #      so attended = value(x2).  Both directions fused:
    #      [th | ih] @ [[0, Wv_it], [Wv_ti, 0]] + [bv_ti | bv_it] = [ta | ia]
    ta_ia = jnp.dot(th_ih, w64_ref[IN_LANES:IN_LANES + H2, :],
                    preferred_element_type=jnp.float32)              # [B, 2H]
    ta_ia = ta_ia + w64_ref[IN_LANES + H2 + 3 * B:IN_LANES + H2 + 4 * B, :]

    all_feat = jnp.concatenate([th_ih, ta_ia], axis=1)               # [B, 4H]

    # ---- fusion gate: Linear(4H -> H) -> LayerNorm -> ReLU
    g = jnp.dot(all_feat, w32_ref[0:H4, :],
                preferred_element_type=jnp.float32)                  # [B, H]
    g = g + w32_ref[H4:H4 + B, :]
    gs = jnp.sum(g, axis=-1, keepdims=True)
    gq = jnp.sum(g * g, axis=-1, keepdims=True)
    gmean = gs * inv_h
    gvar = gq * inv_h - gmean * gmean
    gamma_f = w32_ref[H4 + B:H4 + 2 * B, :]
    beta_f = w32_ref[H4 + 2 * B:H4 + 3 * B, :]
    g = jnp.maximum((g - gmean) * jax.lax.rsqrt(gvar + EPS) * gamma_f + beta_f, 0.0)

    # ---- gate head replicated per 32-lane block: each logit lands repeated H
    #      times, so softmax = lane max / (lane sum / H) and gating is pure VPU.
    logits = jnp.dot(g, w128_ref[0:H, :],
                     preferred_element_type=jnp.float32)             # [B, 4H]
    logits = logits + w128_ref[H:H + B, :]
    m = jnp.max(logits, axis=-1, keepdims=True)
    e = jnp.exp(logits - m)
    s = jnp.sum(e, axis=-1, keepdims=True)           # == H * (sum over the 4 gates)
    w_rep = e * (float(H) * pl.reciprocal(s, approx=True))

    out_ref[...] = (all_feat * w_rep).astype(out_ref.dtype)


def pack_params(params, batch=BATCH):
    """Pack the 26 module parameters into 3 lane-dense slabs.

    Runs ONCE at parameter-load time (host-side numpy) -- not on the forward path.
    Bias/gamma/beta rows are pre-broadcast to `batch` sublanes so the kernel reads
    them with plain aligned loads.
    """
    (wt, bt, gt, btln, wi, bi, gi, biln,
     _wq_ti, _bq_ti, _wk_ti, _bk_ti, wv_ti, bv_ti,
     _wq_it, _bq_it, _wk_it, _bk_it, wv_it, bv_it,
     wf1, bf1, gf, bfln, wf2, bf2) = [np.asarray(p, np.float32) for p in params]
    H = HIDDEN_DIM
    IN = TEXT_DIM + IMAGE_DIM

    def brows(*rows):               # [1, N] rows pre-broadcast to [batch, N]
        return [np.tile(r, (batch, 1)) for r in rows]

    # Stage-1 block-diagonal weight [128, 64]: [[wt, 0], [0, wi], [0, 0]].
    w1 = np.zeros((IN_LANES, 2 * H), np.float32)
    w1[0:TEXT_DIM, 0:H] = wt
    w1[TEXT_DIM:IN, H:2 * H] = wi

    # Fused attention-value projection (q/k/softmax are identity for seq_len == 1).
    wat = np.zeros((2 * H, 2 * H), np.float32)
    wat[0:H, H:2 * H] = wv_it
    wat[H:2 * H, 0:H] = wv_ti

    b1 = np.concatenate([bt, bi], axis=1)                            # [1, 2H]
    gam = np.concatenate([gt, gi], axis=1)
    bet = np.concatenate([btln, biln], axis=1)
    bat = np.concatenate([bv_ti, bv_it], axis=1)

    # 64-lane slab: [w1; wat; b1; gamma; beta; b_attn]               -> [224, 64]
    w64 = np.concatenate([w1, wat] + brows(b1, gam, bet, bat), axis=0)

    # 32-lane slab: [wf1; bf1; gf; bfln]                             -> [152, 32]
    w32 = np.concatenate([wf1] + brows(bf1, gf, bfln), axis=0)

    # 128-lane slab: gate head replicated per 32-lane block          -> [40, 128]
    wf2_rep = np.repeat(wf2, H, axis=1)
    bf2_rep = np.repeat(bf2, H, axis=1)
    w128 = np.concatenate([wf2_rep] + brows(bf2_rep), axis=0)

    return jnp.asarray(w64), jnp.asarray(w32), jnp.asarray(w128)


@jax.jit
def feature_extractor(text_feat, image_feat, w64, w32, w128):
    B = text_feat.shape[0]
    pad = jnp.zeros((B, IN_LANES - TEXT_DIM - IMAGE_DIM), jnp.float32)
    x_in = jnp.concatenate([text_feat, image_feat, pad], axis=1)     # [B, 128]
    out_dim = 4 * HIDDEN_DIM

    def full_spec(shape):
        nd = len(shape)
        return pl.BlockSpec(shape, lambda i, _nd=nd: (0,) * _nd)

    # Single grid step, full-array blocks: footprint is ~100 KB, far under VMEM on
    # v5e/v6e/v7x, and the kernel is latency-bound -- no extra tiling.
    return pl.pallas_call(
        feature_extractor_kernel,
        out_shape=jax.ShapeDtypeStruct((B, out_dim), jnp.float32),
        grid_spec=pltpu.PrefetchScalarGridSpec(
            num_scalar_prefetch=0,
            grid=(1,),
            in_specs=[full_spec(x_in.shape), full_spec(w64.shape),
                      full_spec(w32.shape), full_spec(w128.shape)],
            out_specs=pl.BlockSpec((B, out_dim), lambda i: (0, 0)),
        ),
        compiler_params=pltpu.CompilerParams(
            dimension_semantics=("arbitrary",)),
    )(x_in, w64, w32, w128)


def init_params(key):
    """Deterministic parameter init (torch Linear weights stored as [in, out])."""
    ks = iter(jax.random.split(key, 32))

    def linear(din, dout):
        w = jax.random.normal(next(ks), (din, dout), jnp.float32) / np.sqrt(din)
        b = jax.random.normal(next(ks), (1, dout), jnp.float32) * 0.01
        return w, b

    def layernorm(d):
        return jnp.ones((1, d), jnp.float32), jnp.zeros((1, d), jnp.float32)

    params = []
    # text_transform
    wt, bt = linear(TEXT_DIM, HIDDEN_DIM); gt, btln = layernorm(HIDDEN_DIM)
    params += [wt, bt, gt, btln]
    # image_transform
    wi, bi = linear(IMAGE_DIM, HIDDEN_DIM); gi, biln = layernorm(HIDDEN_DIM)
    params += [wi, bi, gi, biln]
    # text_to_image_attention (q, k, v)
    for _ in range(3):
        w, b = linear(HIDDEN_DIM, HIDDEN_DIM); params += [w, b]
    # image_to_text_attention (q, k, v)
    for _ in range(3):
        w, b = linear(HIDDEN_DIM, HIDDEN_DIM); params += [w, b]
    # fusion_gate
    wf1, bf1 = linear(4 * HIDDEN_DIM, HIDDEN_DIM); gf, bfln = layernorm(HIDDEN_DIM)
    wf2, bf2 = linear(HIDDEN_DIM, 4)
    params += [wf1, bf1, gf, bfln, wf2, bf2]
    return params


def reference_forward(text_feat, image_feat, params):
    """Pure-JAX reference matching the PyTorch forward (eval mode), full math."""
    (wt, bt, gt, btln, wi, bi, gi, biln,
     wq_ti, bq_ti, wk_ti, bk_ti, wv_ti, bv_ti,
     wq_it, bq_it, wk_it, bk_it, wv_it, bv_it,
     wf1, bf1, gf, bfln, wf2, bf2) = params

    def ln(x, g, b):
        mu = x.mean(-1, keepdims=True)
        var = ((x - mu) ** 2).mean(-1, keepdims=True)
        return (x - mu) / jnp.sqrt(var + EPS) * g + b

    scale = HIDDEN_DIM ** -0.5
    th = jax.nn.relu(ln(text_feat @ wt + bt, gt, btln))
    ih = jax.nn.relu(ln(image_feat @ wi + bi, gi, biln))

    def xattn(x1, x2, wq, bq, wk, bk, wv, bv):
        q = (x1 @ wq + bq)[:, None, :]
        k = (x2 @ wk + bk)[:, None, :]
        v = (x2 @ wv + bv)[:, None, :]
        attn = jax.nn.softmax(q @ jnp.swapaxes(k, -2, -1) * scale, axis=-1)
        return (attn @ v)[:, 0, :]

    ta = xattn(th, ih, wq_ti, bq_ti, wk_ti, bk_ti, wv_ti, bv_ti)
    ia = xattn(ih, th, wq_it, bq_it, wk_it, bk_it, wv_it, bv_it)

    allf = jnp.concatenate([th, ih, ta, ia], axis=1)
    g = jax.nn.relu(ln(allf @ wf1 + bf1, gf, bfln))
    w = jax.nn.softmax(g @ wf2 + bf2, axis=1)
    return jnp.concatenate(
        [th * w[:, 0:1], ih * w[:, 1:2], ta * w[:, 2:3], ia * w[:, 3:4]], axis=1)


if __name__ == "__main__":
    key = jax.random.PRNGKey(0)
    k_text, k_image, k_params = jax.random.split(key, 3)

    # pooled encoder outputs (stand-ins for BERT / ViT pooler_output)
    text_feat = jax.random.normal(k_text, (BATCH, TEXT_DIM), jnp.float32)
    image_feat = jax.random.normal(k_image, (BATCH, IMAGE_DIM), jnp.float32)
    params = init_params(k_params)

    # Packing hoisted out of the forward path: done once at parameter-load time.
    w64, w32, w128 = pack_params(params, BATCH)

    out = feature_extractor(text_feat, image_feat, w64, w32, w128)
    out = jax.block_until_ready(out)

    ref = reference_forward(text_feat, image_feat, params)
    assert out.shape == (BATCH, 4 * HIDDEN_DIM)
    np.testing.assert_allclose(np.asarray(out), np.asarray(ref),
                               rtol=1e-3, atol=1e-3)
    print("KERNEL_OK")
</pallas_src>

<mosaic_0001>
module attributes {stable_mosaic.version = 11 : i64} {
  func.func @feature_extractor_kernel(%arg0: i32, %arg1: memref<8x128xf32, #tpu.memory_space<vmem>>, %arg2: memref<224x64xf32, #tpu.memory_space<vmem>>, %arg3: memref<152x32xf32, #tpu.memory_space<vmem>>, %arg4: memref<40x128xf32, #tpu.memory_space<vmem>>, %arg5: memref<8x128xf32, #tpu.memory_space<vmem>>) attributes {dimension_semantics = [#tpu.dimension_semantics<arbitrary>], iteration_bounds = array<i64: 1>, scalar_prefetch = 0 : i64, scratch_operands = 0 : i64, tpu.core_type = #tpu.core_type<tc>, window_params = [{pipeline_mode = #tpu.pipeline_mode<synchronous>, transform_indices = @transform_0, window_bounds = array<i64: 8, 128>}, {pipeline_mode = #tpu.pipeline_mode<synchronous>, transform_indices = @transform_1, window_bounds = array<i64: 224, 64>}, {pipeline_mode = #tpu.pipeline_mode<synchronous>, transform_indices = @transform_2, window_bounds = array<i64: 152, 32>}, {pipeline_mode = #tpu.pipeline_mode<synchronous>, transform_indices = @transform_3, window_bounds = array<i64: 40, 128>}, {pipeline_mode = #tpu.pipeline_mode<synchronous>, transform_indices = @transform_4, window_bounds = array<i64: 8, 128>}]} {
    %c0 = arith.constant 0 : index
    %c0_0 = arith.constant 0 : index
    %0 = vector.load %arg1[%c0, %c0_0] : memref<8x128xf32, #tpu.memory_space<vmem>>, vector<8x128xf32>
    %c0_1 = arith.constant 0 : index
    %c0_2 = arith.constant 0 : index
    %1 = vector.load %arg2[%c0_1, %c0_2] : memref<224x64xf32, #tpu.memory_space<vmem>>, vector<128x64xf32>
    %cst = arith.constant dense<0.000000e+00> : vector<8x64xf32>
    %2 = tpu.matmul %0, %1, %cst {dimension_numbers = #tpu.dot_dimension_numbers<[1], [0], [0], [1], [0, 0, 1, 1], [], []>} : vector<8x128xf32>, vector<128x64xf32>, vector<8x64xf32> -> vector<8x64xf32>
    %c192 = arith.constant 192 : index
    %c0_3 = arith.constant 0 : index
    %3 = vector.load %arg2[%c192, %c0_3] : memref<224x64xf32, #tpu.memory_space<vmem>>, vector<8x64xf32>
    %4 = arith.addf %2, %3 : vector<8x64xf32>
    %5 = tpu.iota {dimensions = array<i32: 1>} : vector<8x64xi32>
    %c32_i32 = arith.constant 32 : i32
    %6 = vector.broadcast %c32_i32 : i32 to vector<8x64xi32>
    %7 = arith.cmpi slt, %5, %6 : vector<8x64xi32>
    %cst_4 = arith.constant 0.000000e+00 : f32
    %8 = vector.broadcast %cst_4 : f32 to vector<8x64xf32>
    %9 = arith.mulf %4, %4 : vector<8x64xf32>
    %10 = arith.select %7, %4, %8 : vector<8x64xi1>, vector<8x64xf32>
    %cst_5 = arith.constant dense<0.000000e+00> : vector<8xf32>
    %11 = vector.multi_reduction <add>, %10, %cst_5 [1] : vector<8x64xf32> to vector<8xf32>
    %12 = vector.shape_cast %11 : vector<8xf32> to vector<8x1xf32>
    %13 = arith.select %7, %8, %4 : vector<8x64xi1>, vector<8x64xf32>
    %cst_6 = arith.constant dense<0.000000e+00> : vector<8xf32>
    %14 = vector.multi_reduction <add>, %13, %cst_6 [1] : vector<8x64xf32> to vector<8xf32>
    %15 = vector.shape_cast %14 : vector<8xf32> to vector<8x1xf32>
    %16 = arith.select %7, %9, %8 : vector<8x64xi1>, vector<8x64xf32>
    %cst_7 = arith.constant dense<0.000000e+00> : vector<8xf32>
    %17 = vector.multi_reduction <add>, %16, %cst_7 [1] : vector<8x64xf32> to vector<8xf32>
    %18 = vector.shape_cast %17 : vector<8xf32> to vector<8x1xf32>
    %19 = arith.select %7, %8, %9 : vector<8x64xi1>, vector<8x64xf32>
    %cst_8 = arith.constant dense<0.000000e+00> : vector<8xf32>
    %20 = vector.multi_reduction <add>, %19, %cst_8 [1] : vector<8x64xf32> to vector<8xf32>
    %21 = vector.shape_cast %20 : vector<8xf32> to vector<8x1xf32>
    %22 = vector.shape_cast %12 : vector<8x1xf32> to vector<8x1xf32>
    %23 = vector.broadcast %22 : vector<8x1xf32> to vector<8x64xf32>
    %24 = vector.shape_cast %15 : vector<8x1xf32> to vector<8x1xf32>
    %25 = vector.broadcast %24 : vector<8x1xf32> to vector<8x64xf32>
    %26 = arith.select %7, %23, %25 : vector<8x64xi1>, vector<8x64xf32>
    %cst_9 = arith.constant 3.125000e-02 : f32
    %27 = vector.broadcast %cst_9 : f32 to vector<8x64xf32>
    %28 = arith.mulf %26, %27 : vector<8x64xf32>
    %29 = vector.shape_cast %18 : vector<8x1xf32> to vector<8x1xf32>
    %30 = vector.broadcast %29 : vector<8x1xf32> to vector<8x64xf32>
    %31 = vector.shape_cast %21 : vector<8x1xf32> to vector<8x1xf32>
    %32 = vector.broadcast %31 : vector<8x1xf32> to vector<8x64xf32>
    %33 = arith.select %7, %30, %32 : vector<8x64xi1>, vector<8x64xf32>
    %cst_10 = arith.constant 3.125000e-02 : f32
    %34 = vector.broadcast %cst_10 : f32 to vector<8x64xf32>
    %35 = arith.mulf %33, %34 : vector<8x64xf32>
    %36 = arith.mulf %28, %28 : vector<8x64xf32>
    %37 = arith.subf %35, %36 : vector<8x64xf32>
    %c200 = arith.constant 200 : index
    %c0_11 = arith.constant 0 : index
    %38 = vector.load %arg2[%c200, %c0_11] : memref<224x64xf32, #tpu.memory_space<vmem>>, vector<8x64xf32>
    %c208 = arith.constant 208 : index
    %c0_12 = arith.constant 0 : index
    %39 = vector.load %arg2[%c208, %c0_12] : memref<224x64xf32, #tpu.memory_space<vmem>>, vector<8x64xf32>
    %40 = arith.subf %4, %28 : vector<8x64xf32>
    %cst_13 = arith.constant 9.99999974E-6 : f32
    %41 = vector.broadcast %cst_13 : f32 to vector<8x64xf32>
    %42 = arith.addf %37, %41 : vector<8x64xf32>
    %43 = math.rsqrt %42 : vector<8x64xf32>
    %44 = arith.mulf %40, %43 : vector<8x64xf32>
    %45 = arith.mulf %44, %38 : vector<8x64xf32>
    %46 = arith.addf %45, %39 : vector<8x64xf32>
    %cst_14 = arith.constant 0.000000e+00 : f32
    %47 = vector.broadcast %cst_14 : f32 to vector<8x64xf32>
    %48 = arith.maximumf %46, %47 : vector<8x64xf32>
    %c128 = arith.constant 128 : index
    %c0_15 = arith.constant 0 : index
    %49 = vector.load %arg2[%c128, %c0_15] : memref<224x64xf32, #tpu.memory_space<vmem>>, vector<64x64xf32>
    %cst_16 = arith.constant dense<0.000000e+00> : vector<8x64xf32>
    %50 = tpu.matmul %48, %49, %cst_16 {dimension_numbers = #tpu.dot_dimension_numbers<[1], [0], [0], [1], [0, 0, 1, 1], [], []>} : vector<8x64xf32>, vector<64x64xf32>, vector<8x64xf32> -> vector<8x64xf32>
    %c216 = arith.constant 216 : index
    %c0_17 = arith.constant 0 : index
    %51 = vector.load %arg2[%c216, %c0_17] : memref<224x64xf32, #tpu.memory_space<vmem>>, vector<8x64xf32>
    %52 = arith.addf %50, %51 : vector<8x64xf32>
    %53 = tpu.concatenate %48, %52 in 1 : vector<8x64xf32>, vector<8x64xf32> -> vector<8x128xf32>
    %c0_18 = arith.constant 0 : index
    %c0_19 = arith.constant 0 : index
    %54 = vector.load %arg3[%c0_18, %c0_19] : memref<152x32xf32, #tpu.memory_space<vmem>>, vector<128x32xf32>
    %cst_20 = arith.constant dense<0.000000e+00> : vector<8x32xf32>
    %55 = tpu.matmul %53, %54, %cst_20 {dimension_numbers = #tpu.dot_dimension_numbers<[1], [0], [0], [1], [0, 0, 1, 1], [], []>} : vector<8x128xf32>, vector<128x32xf32>, vector<8x32xf32> -> vector<8x32xf32>
    %c128_21 = arith.constant 128 : index
    %c0_22 = arith.constant 0 : index
    %56 = vector.load %arg3[%c128_21, %c0_22] : memref<152x32xf32, #tpu.memory_space<vmem>>, vector<8x32xf32>
    %57 = arith.addf %55, %56 : vector<8x32xf32>
    %cst_23 = arith.constant dense<0.000000e+00> : vector<8xf32>
    %58 = vector.multi_reduction <add>, %57, %cst_23 [1] : vector<8x32xf32> to vector<8xf32>
    %59 = vector.shape_cast %58 : vector<8xf32> to vector<8x1xf32>
    %60 = arith.mulf %57, %57 : vector<8x32xf32>
    %cst_24 = arith.constant dense<0.000000e+00> : vector<8xf32>
    %61 = vector.multi_reduction <add>, %60, %cst_24 [1] : vector<8x32xf32> to vector<8xf32>
    %62 = vector.shape_cast %61 : vector<8xf32> to vector<8x1xf32>
    %cst_25 = arith.constant 3.125000e-02 : f32
    %63 = vector.broadcast %cst_25 : f32 to vector<8x1xf32>
    %64 = arith.mulf %59, %63 : vector<8x1xf32>
    %cst_26 = arith.constant 3.125000e-02 : f32
    %65 = vector.broadcast %cst_26 : f32 to vector<8x1xf32>
    %66 = arith.mulf %62, %65 : vector<8x1xf32>
    %67 = arith.mulf %64, %64 : vector<8x1xf32>
    %68 = arith.subf %66, %67 : vector<8x1xf32>
    %c136 = arith.constant 136 : index
    %c0_27 = arith.constant 0 : index
    %69 = vector.load %arg3[%c136, %c0_27] : memref<152x32xf32, #tpu.memory_space<vmem>>, vector<8x32xf32>
    %c144 = arith.constant 144 : index
    %c0_28 = arith.constant 0 : index
    %70 = vector.load %arg3[%c144, %c0_28] : memref<152x32xf32, #tpu.memory_space<vmem>>, vector<8x32xf32>
    %71 = vector.broadcast %64 : vector<8x1xf32> to vector<8x32xf32>
    %72 = arith.subf %57, %71 : vector<8x32xf32>
    %cst_29 = arith.constant 9.99999974E-6 : f32
    %73 = vector.broadcast %cst_29 : f32 to vector<8x1xf32>
    %74 = arith.addf %68, %73 : vector<8x1xf32>
    %75 = math.rsqrt %74 : vector<8x1xf32>
    %76 = vector.broadcast %75 : vector<8x1xf32> to vector<8x32xf32>
    %77 = arith.mulf %72, %76 : vector<8x32xf32>
    %78 = arith.mulf %77, %69 : vector<8x32xf32>
    %79 = arith.addf %78, %70 : vector<8x32xf32>
    %cst_30 = arith.constant 0.000000e+00 : f32
    %80 = vector.broadcast %cst_30 : f32 to vector<8x32xf32>
    %81 = arith.maximumf %79, %80 : vector<8x32xf32>
    %c0_31 = arith.constant 0 : index
    %c0_32 = arith.constant 0 : index
    %82 = vector.load %arg4[%c0_31, %c0_32] : memref<40x128xf32, #tpu.memory_space<vmem>>, vector<32x128xf32>
    %cst_33 = arith.constant dense<0.000000e+00> : vector<8x128xf32>
    %83 = tpu.matmul %81, %82, %cst_33 {dimension_numbers = #tpu.dot_dimension_numbers<[1], [0], [0], [1], [0, 0, 1, 1], [], []>} : vector<8x32xf32>, vector<32x128xf32>, vector<8x128xf32> -> vector<8x128xf32>
    %c32 = arith.constant 32 : index
    %c0_34 = arith.constant 0 : index
    %84 = vector.load %arg4[%c32, %c0_34] : memref<40x128xf32, #tpu.memory_space<vmem>>, vector<8x128xf32>
    %85 = arith.addf %83, %84 : vector<8x128xf32>
    %cst_35 = arith.constant dense<0xFF800000> : vector<8xf32>
    %86 = vector.multi_reduction <maximumf>, %85, %cst_35 [1] : vector<8x128xf32> to vector<8xf32>
    %87 = vector.shape_cast %86 : vector<8xf32> to vector<8x1xf32>
    %88 = vector.broadcast %87 : vector<8x1xf32> to vector<8x128xf32>
    %89 = arith.subf %85, %88 : vector<8x128xf32>
    %90 = math.exp %89 : vector<8x128xf32>
    %cst_36 = arith.constant dense<0.000000e+00> : vector<8xf32>
    %91 = vector.multi_reduction <add>, %90, %cst_36 [1] : vector<8x128xf32> to vector<8xf32>
    %92 = vector.shape_cast %91 : vector<8xf32> to vector<8x1xf32>
    %93 = tpu.reciprocal %92 {approx = true} : vector<8x1xf32> -> vector<8x1xf32>
    %cst_37 = arith.constant 3.200000e+01 : f32
    %94 = vector.broadcast %cst_37 : f32 to vector<8x1xf32>
    %95 = arith.mulf %94, %93 : vector<8x1xf32>
    %96 = vector.broadcast %95 : vector<8x1xf32> to vector<8x128xf32>
    %97 = arith.mulf %90, %96 : vector<8x128xf32>
    %98 = arith.mulf %53, %97 : vector<8x128xf32>
    %c0_38 = arith.constant 0 : index
    %c0_39 = arith.constant 0 : index
    %99 = vector.load %arg5[%c0_38, %c0_39] : memref<8x128xf32, #tpu.memory_space<vmem>>, vector<8x128xf32>
    tpu.vector_store %arg5[%c0_38, %c0_39], %98 {strides = array<i32>} : memref<8x128xf32, #tpu.memory_space<vmem>>, vector<8x128xf32>,
    return
  }
  func.func @transform_0(%arg0: i32) -> (i32, i32) {
    %c0_i32 = arith.constant 0 : i32
    %c0_i32_0 = arith.constant 0 : i32
    %c0_i32_1 = arith.constant 0 : i32
    return %c0_i32, %c0_i32_0 : i32, i32
  }
  func.func @transform_1(%arg0: i32) -> (i32, i32) {
    %c0_i32 = arith.constant 0 : i32
    %c0_i32_0 = arith.constant 0 : i32
    %c0_i32_1 = arith.constant 0 : i32
    return %c0_i32, %c0_i32_0 : i32, i32
  }
  func.func @transform_2(%arg0: i32) -> (i32, i32) {
    %c0_i32 = arith.constant 0 : i32
    %c0_i32_0 = arith.constant 0 : i32
    %c0_i32_1 = arith.constant 0 : i32
    return %c0_i32, %c0_i32_0 : i32, i32
  }
  func.func @transform_3(%arg0: i32) -> (i32, i32) {
    %c0_i32 = arith.constant 0 : i32
    %c0_i32_0 = arith.constant 0 : i32
    %c0_i32_1 = arith.constant 0 : i32
    return %c0_i32, %c0_i32_0 : i32, i32
  }
  func.func @transform_4(%arg0: i32) -> (i32, i32) {
    %c0_i32 = arith.constant 0 : i32
    %c0_i32_0 = arith.constant 0 : i32
    %c0_i32_1 = arith.constant 0 : i32
    return %c0_i32, %c0_i32_0 : i32, i32
  }
}

</mosaic_0001>

<llo_original>
// kernel: feature_extractor.1
$region0: #{feature_extractor.1}
  #allocation0 [shape = 'u32[]', space=smem, size = 0x4, offset = 0x4, fixed_abs, tag = 'smem constant byte address 0x4 - core index']
  #allocation1 [shape = 'u32[144,128]{1,0:T(1,128)}', space=vmem, size = 0x12000, scoped, tag = 'internal scratch']
  %s0 = inlined_call_operand.vmem [shape: f32[8,128], index: 0, kind: input, shape index: {}]
  %s1 = inlined_call_operand.vmem [shape: f32[224,64], index: 1, kind: input, shape index: {}]
  %s2 = inlined_call_operand.vmem [shape: f32[152,32], index: 2, kind: input, shape index: {}]
  %s3 = inlined_call_operand.vmem [shape: f32[40,128], index: 3, kind: input, shape index: {}]
  %s4 = inlined_call_operand.hbm [shape: f32[8,128], index: 4, kind: output, shape index: {}]
  %s5 = sld [smem:[#allocation0]]
  $region26: #{feature_extractor.1} parent=0
    _
  %s7 = ssub.s32 1, %s5
  %s8 = scalar_select 0, %s7, %s5
  $region1: #{feature_extractor.1} parent=0
    #allocation2 [shape = 'u8[4096]{0}', space=vmem, size = 0x1000, scoped, tag = 'output window, operand 0, single buffered']
    #allocation3 [shape = 's32[1]{0}', space=sflag, size = 0x4, scoped, tag = 'scoped memory for feature_extractor.1']
    %9 = vsyncpa [#allocation3], 0
    // Predicated region
    $region2: #{feature_extractor.1} parent=1 // pred_check
      _
    $region3: #{feature_extractor.1} parent=1 // pred_check_branch
      %11 = sbr.rel (0) target = $region5
    $region4: #{feature_extractor.1} parent=1 // pred_region
      _
    $region5: #{feature_extractor.1} parent=1 // pred_fallthru
      _
    // Predicated region
    $region6: #{feature_extractor.1} parent=1 // pred_check
      _
    $region7: #{feature_extractor.1} parent=1 // pred_check_branch
      %13 = sbr.rel (0) target = $region9
    $region8: #{feature_extractor.1} parent=1 // pred_region
      _
    $region9: #{feature_extractor.1} parent=1 // pred_fallthru
      _
    // Predicated region
    $region10: #{feature_extractor.1} parent=1 // pred_check
      _
    $region11: #{feature_extractor.1} parent=1 // pred_check_branch
      %15 = sbr.rel (0) target = $region13
    $region12: #{feature_extractor.1} parent=1 // pred_region
      _
    $region13: #{feature_extractor.1} parent=1 // pred_fallthru
      _
    // Predicated region
    $region14: #{feature_extractor.1} parent=1 // pred_check
      _
    $region15: #{feature_extractor.1} parent=1 // pred_check_branch
      %17 = sbr.rel (0) target = $region17
    $region16: #{feature_extractor.1} parent=1 // pred_region
      _
    $region17: #{feature_extractor.1} parent=1 // pred_fallthru
      _
    %v18 = vld [vmem:[%s0] sm:$0xff]
    %v19 = vld [vmem:[%s1] sm:$0xff]
    %v20 = vld [vmem:[%s1 + $0x8] sm:$0xff]
    %v21 = vld [vmem:[%s1 + $0x10] sm:$0xff]
    %v22 = vld [vmem:[%s1 + $0x18] sm:$0xff]
    %v23 = vld [vmem:[%s1 + $0x20] sm:$0xff]
    %v24 = vld [vmem:[%s1 + $0x28] sm:$0xff]
    %v25 = vld [vmem:[%s1 + $0x30] sm:$0xff]
    %v26 = vld [vmem:[%s1 + $0x38] sm:$0xff]
    %v27 = vld [vmem:[%s1 + $0x40] sm:$0xff]
    %v28 = vld [vmem:[%s1 + $0x48] sm:$0xff]
    %v29 = vld [vmem:[%s1 + $0x50] sm:$0xff]
    %v30 = vld [vmem:[%s1 + $0x58] sm:$0xff]
    %v31 = vld [vmem:[%s1 + $0x60] sm:$0xff]
    %v32 = vld [vmem:[%s1 + $0x68] sm:$0xff]
    %v33 = vld [vmem:[%s1 + $0x70] sm:$0xff]
    %v34 = vld [vmem:[%s1 + $0x78] sm:$0xff]
    %v35 = vld [vmem:[%s1 + $0xc0] sm:$0xff]
    %36 = vmatprep.subr.mxu0 0.0
    %37 = vmatpush1.msra.mxu0 %v19
    %38 = vmatprep.subr.mxu0 0.0
    %39 = vmatpush1.msra.mxu0 %v20
    %40 = vmatprep.subr.mxu0 0.0
    %41 = vmatpush1.msra.mxu0 %v21
    %42 = vmatprep.subr.mxu0 0.0
    %43 = vmatpush1.msra.mxu0 %v22
    %44 = vmatprep.subr.mxu0 0.0
    %45 = vmatpush1.msra.mxu0 %v23
    %46 = vmatprep.subr.mxu0 0.0
    %47 = vmatpush1.msra.mxu0 %v24
    %48 = vmatprep.subr.mxu0 0.0
    %49 = vmatpush1.msra.mxu0 %v25
    %50 = vmatprep.subr.mxu0 0.0
    %51 = vmatpush1.msra.mxu0 %v26
    %52 = vmatprep.subr.mxu0 0.0
    %53 = vmatpush1.msra.mxu0 %v27
    %54 = vmatprep.subr.mxu0 0.0
    %55 = vmatpush1.msra.mxu0 %v28
    %56 = vmatprep.subr.mxu0 0.0
    %57 = vmatpush1.msra.mxu0 %v29
    %58 = vmatprep.subr.mxu0 0.0
    %59 = vmatpush1.msra.mxu0 %v30
    %60 = vmatprep.subr.mxu0 0.0
    %61 = vmatpush1.msra.mxu0 %v31
    %62 = vmatprep.subr.mxu0 0.0
    %63 = vmatpush1.msra.mxu0 %v32
    %64 = vmatprep.subr.mxu0 0.0
    %65 = vmatpush1.msra.mxu0 %v33
    %66 = vmatprep.subr.mxu0 0.0
    %67 = vmatpush1.msra.mxu0 %v34
    %68 = vmatprep.subr.mxu0 0.0
    %69 = vmatpush1.msra.mxu0 0.0
    %70 = vmatprep.subr.mxu0 0.0
    %71 = vmatpush1.msra.mxu0 0.0
    %72 = vmatprep.subr.mxu0 0.0
    %73 = vmatpush1.msra.mxu0 0.0
    %74 = vmatprep.subr.mxu0 0.0
    %75 = vmatpush1.msra.mxu0 0.0
    %76 = vmatprep.subr.mxu0 0.0
    %77 = vmatpush1.msra.mxu0 0.0
    %78 = vmatprep.subr.mxu0 0.0
    %79 = vmatpush1.msra.mxu0 0.0
    %80 = vmatprep.subr.mxu0 0.0
    %81 = vmatpush1.msra.mxu0 0.0
    %82 = vmatprep.subr.mxu0 0.0
    %83 = vmatpush1.msra.mxu0 0.0
    %84 = vmatprep.subr.mxu0 0.0
    %85 = vmatpush1.msra.mxu0 0.0
    %86 = vmatprep.subr.mxu0 0.0
    %87 = vmatpush1.msra.mxu0 0.0
    %88 = vmatprep.subr.mxu0 0.0
    %89 = vmatpush1.msra.mxu0 0.0
    %90 = vmatprep.subr.mxu0 0.0
    %91 = vmatpush1.msra.mxu0 0.0
    %92 = vmatprep.subr.mxu0 0.0
    %93 = vmatpush1.msra.mxu0 0.0
    %94 = vmatprep.subr.mxu0 0.0
    %95 = vmatpush1.msra.mxu0 0.0
    %96 = vmatprep.subr.mxu0 0.0
    %97 = vmatpush1.msra.mxu0 0.0
    %98 = vmatprep.subr.mxu0 0.0
    %99 = vmatpush1.msra.mxu0 0.0
    %100 = vmatprep.mubr.f32.mxu0 0.0
    %101 = vmatmul.mubr.f32.gmra.mrb[0].mxu0 %v18
    %v102 = vpop.f32.mrb[0].mxu0
    %v103 = vadd.f32 %v35, %v102
    %v104 = vpop.f32.mrb[0].mxu0
    %105 = vdwg.mxu0
    %v106 = vlaneseq
    %v107 = vand.u32 %v106, 127
    %vm108 = vcmp.lt.s32.totalorder %v107, 32
    %v109 = vmul.f32 %v103, %v103
    %v110 = vsel %vm108, %v103, 0.0
    %vm111 = vcmask 523264
    %v112 = vsel %vm111, %v110, 0.0
    %113 = vadd.xlane.f32.xlu0 %v112
    %v114 = vpop.xlane.xlu0 %113
    %v115 = vsel %vm108, 0.0, %v103
    %v116 = vsel %vm111, %v115, 0.0
    %117 = vadd.xlane.f32.xlu0 %v116
    %v118 = vpop.xlane.xlu0 %117
    %v119 = vsel %vm108, %v109, 0.0
    %v120 = vsel %vm111, %v119, 0.0
    %121 = vadd.xlane.f32.xlu0 %v120
    %v122 = vpop.xlane.xlu0 %121
    %v123 = vsel %vm108, 0.0, %v109
    %v124 = vsel %vm111, %v123, 0.0
    %125 = vadd.xlane.f32.xlu0 %v124
    %v126 = vpop.xlane.xlu0 %125
    %v127 = vsel %vm108, %v114, %v118
    %v128 = vmul.f32 %v127, 0.03125
    %v129 = vsel %vm108, %v122, %v126
    %v130 = vmul.f32 %v129, 0.03125
    %v131 = vmul.f32 %v128, %v128
    %v132 = vsub.f32 %v130, %v131
    %v133 = vld [vmem:[%s1 + $0xc8] sm:$0xff]
    %v134 = vld [vmem:[%s1 + $0xd0] sm:$0xff]
    %v135 = vsub.f32 %v103, %v128
    %v136 = vadd.f32 %v132, 1e-05
    %v137 = vrsqrt.pop %v136
    %v138 = vmul.f32 %v135, %v137
    %v139 = vmul.f32 %v138, %v133
    %v140 = vadd.f32 %v139, %v134
    %v141 = vmax.f32 %v140, 0.0
    %v142 = vld [vmem:[%s1 + $0x80] sm:$0xff]
    %v143 = vld [vmem:[%s1 + $0x88] sm:$0xff]
    %v144 = vld [vmem:[%s1 + $0x90] sm:$0xff]
    %v145 = vld [vmem:[%s1 + $0x98] sm:$0xff]
    %v146 = vld [vmem:[%s1 + $0xa0] sm:$0xff]
    %v147 = vld [vmem:[%s1 + $0xa8] sm:$0xff]
    %v148 = vld [vmem:[%s1 + $0xb0] sm:$0xff]
    %v149 = vld [vmem:[%s1 + $0xb8] sm:$0xff]
    %v150 = vld [vmem:[%s1 + $0xd8] sm:$0xff]
    %v152 = vsel %vm111, %v141, 0
    %154 = vmatprep.subr.mxu0 0.0
    %155 = vmatpush1.msra.mxu0 %v142
    %156 = vmatprep.subr.mxu0 0.0
    %157 = vmatpush1.msra.mxu0 %v143
    %158 = vmatprep.subr.mxu0 0.0
    %159 = vmatpush1.msra.mxu0 %v144
    %160 = vmatprep.subr.mxu0 0.0
    %161 = vmatpush1.msra.mxu0 %v145
    %162 = vmatprep.subr.mxu0 0.0
    %163 = vmatpush1.msra.mxu0 %v146
    %164 = vmatprep.subr.mxu0 0.0
    %165 = vmatpush1.msra.mxu0 %v147
    %166 = vmatprep.subr.mxu0 0.0
    %167 = vmatpush1.msra.mxu0 %v148
    %168 = vmatprep.subr.mxu0 0.0
    %169 = vmatpush1.msra.mxu0 %v149
    %170 = vmatprep.subr.mxu0 0.0
    %171 = vmatpush1.msra.mxu0 0.0
    %172 = vmatprep.subr.mxu0 0.0
    %173 = vmatpush1.msra.mxu0 0.0
    %174 = vmatprep.subr.mxu0 0.0
    %175 = vmatpush1.msra.mxu0 0.0
    %176 = vmatprep.subr.mxu0 0.0
    %177 = vmatpush1.msra.mxu0 0.0
    %178 = vmatprep.subr.mxu0 0.0
    %179 = vmatpush1.msra.mxu0 0.0
    %180 = vmatprep.subr.mxu0 0.0
    %181 = vmatpush1.msra.mxu0 0.0
    %182 = vmatprep.subr.mxu0 0.0
    %183 = vmatpush1.msra.mxu0 0.0
    %184 = vmatprep.subr.mxu0 0.0
    %185 = vmatpush1.msra.mxu0 0.0
    %186 = vmatprep.subr.mxu0 0.0
    %187 = vmatpush1.msra.mxu0 0.0
    %188 = vmatprep.subr.mxu0 0.0
    %189 = vmatpush1.msra.mxu0 0.0
    %190 = vmatprep.subr.mxu0 0.0
    %191 = vmatpush1.msra.mxu0 0.0
    %192 = vmatprep.subr.mxu0 0.0
    %193 = vmatpush1.msra.mxu0 0.0
    %194 = vmatprep.subr.mxu0 0.0
    %195 = vmatpush1.msra.mxu0 0.0
    %196 = vmatprep.subr.mxu0 0.0
    %197 = vmatpush1.msra.mxu0 0.0
    %198 = vmatprep.subr.mxu0 0.0
    %199 = vmatpush1.msra.mxu0 0.0
    %200 = vmatprep.subr.mxu0 0.0
    %201 = vmatpush1.msra.mxu0 0.0
    %202 = vmatprep.subr.mxu0 0.0
    %203 = vmatpush1.msra.mxu0 0.0
    %204 = vmatprep.subr.mxu0 0.0
    %205 = vmatpush1.msra.mxu0 0.0
    %206 = vmatprep.subr.mxu0 0.0
    %207 = vmatpush1.msra.mxu0 0.0
    %208 = vmatprep.subr.mxu0 0.0
    %209 = vmatpush1.msra.mxu0 0.0
    %210 = vmatprep.subr.mxu0 0.0
    %211 = vmatpush1.msra.mxu0 0.0
    %212 = vmatprep.subr.mxu0 0.0
    %213 = vmatpush1.msra.mxu0 0.0
    %214 = vmatprep.subr.mxu0 0.0
    %215 = vmatpush1.msra.mxu0 0.0
    %216 = vmatprep.subr.mxu0 0.0
    %217 = vmatpush1.msra.mxu0 0.0
    %218 = vmatprep.mubr.f32.mxu0 0.0
    %219 = vmatmul.mubr.f32.gmra.mrb[0].mxu0 %v152
    %v220 = vpop.f32.mrb[0].mxu0
    %v221 = vadd.f32 %v150, %v220
    %v222 = vpop.f32.mrb[0].mxu0
    %223 = vdwg.mxu0
    %225 = vrot.lane.b32.xlu0 %v221, 64
    %v226 = vpop.permute.xlu0 %225
    %v228 = vsel %vm111, %v141, %v226
    %v229 = vld [vmem:[%s2] sm:$0xff]
    %v230 = vld [vmem:[%s2 + $0x8] sm:$0xff]
    %v231 = vld [vmem:[%s2 + $0x10] sm:$0xff]
    %v232 = vld [vmem:[%s2 + $0x18] sm:$0xff]
    %v233 = vld [vmem:[%s2 + $0x20] sm:$0xff]
    %v234 = vld [vmem:[%s2 + $0x28] sm:$0xff]
    %v235 = vld [vmem:[%s2 + $0x30] sm:$0xff]
    %v236 = vld [vmem:[%s2 + $0x38] sm:$0xff]
    %v237 = vld [vmem:[%s2 + $0x40] sm:$0xff]
    %v238 = vld [vmem:[%s2 + $0x48] sm:$0xff]
    %v239 = vld [vmem:[%s2 + $0x50] sm:$0xff]
    %v240 = vld [vmem:[%s2 + $0x58] sm:$0xff]
    %v241 = vld [vmem:[%s2 + $0x60] sm:$0xff]
    %v242 = vld [vmem:[%s2 + $0x68] sm:$0xff]
    %v243 = vld [vmem:[%s2 + $0x70] sm:$0xff]
    %v244 = vld [vmem:[%s2 + $0x78] sm:$0xff]
    %v245 = vld [vmem:[%s2 + $0x80] sm:$0xff]
    %246 = vmatprep.subr.mxu0 0.0
    %247 = vmatpush1.msra.mxu0 %v229
    %248 = vmatprep.subr.mxu0 0.0
    %249 = vmatpush1.msra.mxu0 %v230
    %250 = vmatprep.subr.mxu0 0.0
    %251 = vmatpush1.msra.mxu0 %v231
    %252 = vmatprep.subr.mxu0 0.0
    %253 = vmatpush1.msra.mxu0 %v232
    %254 = vmatprep.subr.mxu0 0.0
    %255 = vmatpush1.msra.mxu0 %v233
    %256 = vmatprep.subr.mxu0 0.0
    %257 = vmatpush1.msra.mxu0 %v234
    %258 = vmatprep.subr.mxu0 0.0
    %259 = vmatpush1.msra.mxu0 %v235
    %260 = vmatprep.subr.mxu0 0.0
    %261 = vmatpush1.msra.mxu0 %v236
    %262 = vmatprep.subr.mxu0 0.0
    %263 = vmatpush1.msra.mxu0 %v237
    %264 = vmatprep.subr.mxu0 0.0
    %265 = vmatpush1.msra.mxu0 %v238
    %266 = vmatprep.subr.mxu0 0.0
    %267 = vmatpush1.msra.mxu0 %v239
    %268 = vmatprep.subr.mxu0 0.0
    %269 = vmatpush1.msra.mxu0 %v240
    %270 = vmatprep.subr.mxu0 0.0
    %271 = vmatpush1.msra.mxu0 %v241
    %272 = vmatprep.subr.mxu0 0.0
    %273 = vmatpush1.msra.mxu0 %v242
    %274 = vmatprep.subr.mxu0 0.0
    %275 = vmatpush1.msra.mxu0 %v243
    %276 = vmatprep.subr.mxu0 0.0
    %277 = vmatpush1.msra.mxu0 %v244
    %278 = vmatprep.subr.mxu0 0.0
    %279 = vmatpush1.msra.mxu0 0.0
    %280 = vmatprep.subr.mxu0 0.0
    %281 = vmatpush1.msra.mxu0 0.0
    %282 = vmatprep.subr.mxu0 0.0
    %283 = vmatpush1.msra.mxu0 0.0
    %284 = vmatprep.subr.mxu0 0.0
    %285 = vmatpush1.msra.mxu0 0.0
    %286 = vmatprep.subr.mxu0 0.0
    %287 = vmatpush1.msra.mxu0 0.0
    %288 = vmatprep.subr.mxu0 0.0
    %289 = vmatpush1.msra.mxu0 0.0
    %290 = vmatprep.subr.mxu0 0.0
    %291 = vmatpush1.msra.mxu0 0.0
    %292 = vmatprep.subr.mxu0 0.0
    %293 = vmatpush1.msra.mxu0 0.0
    %294 = vmatprep.subr.mxu0 0.0
    %295 = vmatpush1.msra.mxu0 0.0
    %296 = vmatprep.subr.mxu0 0.0
    %297 = vmatpush1.msra.mxu0 0.0
    %298 = vmatprep.subr.mxu0 0.0
    %299 = vmatpush1.msra.mxu0 0.0
    %300 = vmatprep.subr.mxu0 0.0
    %301 = vmatpush1.msra.mxu0 0.0
    %302 = vmatprep.subr.mxu0 0.0
    %303 = vmatpush1.msra.mxu0 0.0
    %304 = vmatprep.subr.mxu0 0.0
    %305 = vmatpush1.msra.mxu0 0.0
    %306 = vmatprep.subr.mxu0 0.0
    %307 = vmatpush1.msra.mxu0 0.0
    %308 = vmatprep.subr.mxu0 0.0
    %309 = vmatpush1.msra.mxu0 0.0
    %310 = vmatprep.mubr.f32.mxu0 0.0
    %311 = vmatmul.mubr.f32.gmra.mrb[0].mxu0 %v228
    %v312 = vpop.f32.mrb[0].mxu0
    %v313 = vadd.f32 %v245, %v312
    %v314 = vpop.f32.mrb[0].mxu0
    %315 = vdwg.mxu0
    %vm316 = vcmask 261120
    %v317 = vsel %vm316, %v313, 0.0
    %318 = vadd.xlane.f32.xlu0 %v317
    %v319 = vpop.xlane.xlu0 %318
    %v320 = vmul.f32 %v313, %v313
    %v321 = vsel %vm316, %v320, 0.0
    %322 = vadd.xlane.f32.xlu0 %v321
    %v323 = vpop.xlane.xlu0 %322
    %v324 = vmul.f32 %v319, 0.03125
    %v325 = vmul.f32 %v323, 0.03125
    %v326 = vmul.f32 %v324, %v324
    %v327 = vsub.f32 %v325, %v326
    %v328 = vld [vmem:[%s2 + $0x88] sm:$0xff]
    %v329 = vld [vmem:[%s2 + $0x90] sm:$0xff]
    %v330 = vsub.f32 %v313, %v324
    %v331 = vadd.f32 %v327, 1e-05
    %v332 = vrsqrt.pop %v331
    %v333 = vmul.f32 %v330, %v332
    %v334 = vmul.f32 %v333, %v328
    %v335 = vadd.f32 %v334, %v329
    %v336 = vmax.f32 %v335, 0.0
    %v337 = vld [vmem:[%s3] sm:$0xff]
    %v338 = vld [vmem:[%s3 + $0x8] sm:$0xff]
    %v339 = vld [vmem:[%s3 + $0x10] sm:$0xff]
    %v340 = vld [vmem:[%s3 + $0x18] sm:$0xff]
    %v341 = vld [vmem:[%s3 + $0x20] sm:$0xff]
    %v343 = vsel %vm316, %v336, 0
    %345 = vmatprep.subr.mxu0 0.0
    %346 = vmatpush1.msra.mxu0 %v337
    %347 = vmatprep.subr.mxu0 0.0
    %348 = vmatpush1.msra.mxu0 %v338
    %349 = vmatprep.subr.mxu0 0.0
    %350 = vmatpush1.msra.mxu0 %v339
    %351 = vmatprep.subr.mxu0 0.0
    %352 = vmatpush1.msra.mxu0 %v340
    %353 = vmatprep.subr.mxu0 0.0
    %354 = vmatpush1.msra.mxu0 0.0
    %355 = vmatprep.subr.mxu0 0.0
    %356 = vmatpush1.msra.mxu0 0.0
    %357 = vmatprep.subr.mxu0 0.0
    %358 = vmatpush1.msra.mxu0 0.0
    %359 = vmatprep.subr.mxu0 0.0
    %360 = vmatpush1.msra.mxu0 0.0
    %361 = vmatprep.subr.mxu0 0.0
    %362 = vmatpush1.msra.mxu0 0.0
    %363 = vmatprep.subr.mxu0 0.0
    %364 = vmatpush1.msra.mxu0 0.0
    %365 = vmatprep.subr.mxu0 0.0
    %366 = vmatpush1.msra.mxu0 0.0
    %367 = vmatprep.subr.mxu0 0.0
    %368 = vmatpush1.msra.mxu0 0.0
    %369 = vmatprep.subr.mxu0 0.0
    %370 = vmatpush1.msra.mxu0 0.0
    %371 = vmatprep.subr.mxu0 0.0
    %372 = vmatpush1.msra.mxu0 0.0
    %373 = vmatprep.subr.mxu0 0.0
    %374 = vmatpush1.msra.mxu0 0.0
    %375 = vmatprep.subr.mxu0 0.0
    %376 = vmatpush1.msra.mxu0 0.0
    %377 = vmatprep.subr.mxu0 0.0
    %378 = vmatpush1.msra.mxu0 0.0
    %379 = vmatprep.subr.mxu0 0.0
    %380 = vmatpush1.msra.mxu0 0.0
    %381 = vmatprep.subr.mxu0 0.0
    %382 = vmatpush1.msra.mxu0 0.0
    %383 = vmatprep.subr.mxu0 0.0
    %384 = vmatpush1.msra.mxu0 0.0
    %385 = vmatprep.subr.mxu0 0.0
    %386 = vmatpush1.msra.mxu0 0.0
    %387 = vmatprep.subr.mxu0 0.0
    %388 = vmatpush1.msra.mxu0 0.0
    %389 = vmatprep.subr.mxu0 0.0
    %390 = vmatpush1.msra.mxu0 0.0
    %391 = vmatprep.subr.mxu0 0.0
    %392 = vmatpush1.msra.mxu0 0.0
    %393 = vmatprep.subr.mxu0 0.0
    %394 = vmatpush1.msra.mxu0 0.0
    %395 = vmatprep.subr.mxu0 0.0
    %396 = vmatpush1.msra.mxu0 0.0
    %397 = vmatprep.subr.mxu0 0.0
    %398 = vmatpush1.msra.mxu0 0.0
    %399 = vmatprep.subr.mxu0 0.0
    %400 = vmatpush1.msra.mxu0 0.0
    %401 = vmatprep.subr.mxu0 0.0
    %402 = vmatpush1.msra.mxu0 0.0
    %403 = vmatprep.subr.mxu0 0.0
    %404 = vmatpush1.msra.mxu0 0.0
    %405 = vmatprep.subr.mxu0 0.0
    %406 = vmatpush1.msra.mxu0 0.0
    %407 = vmatprep.subr.mxu0 0.0
    %408 = vmatpush1.msra.mxu0 0.0
    %409 = vmatprep.mubr.f32.mxu0 0.0
    %410 = vmatmul.mubr.f32.gmra.mrb[0].mxu0 %v343
    %v411 = vpop.f32.mrb[0].mxu0
    %v412 = vadd.f32 %v341, %v411
    %v413 = vpop.f32.mrb[0].mxu0
    %414 = vdwg.mxu0
    %415 = vmax.xlane.f32.xlu0 %v412
    %v416 = vpop.xlane.xlu0 %415
    %v417 = vsub.f32 %v412, %v416
    %v418 = vmul.f32 %v417, 1.442695
    %v419 = vpow.pop %v418
    %420 = vadd.xlane.f32.xlu0 %v419
    %v421 = vpop.xlane.xlu0 %420
    %v422 = vrcp.pop %v421
    %v423 = vmul.f32 %v422, 32.0
    %v424 = vmul.f32 %v419, %v423
    %v425 = vmul.f32 %v228, %v424
    %426 = vst [vmem:[#allocation2] sm:$0xff] %v425
    // Predicated region
    $region18: #{feature_extractor.1} parent=1 // pred_check
      _
    $region19: #{feature_extractor.1} parent=1 // pred_check_branch
      %428 = sbr.rel (0) target = $region21
    $region20: #{feature_extractor.1} parent=1 // pred_region
      %s430 = ssub.s32 128, 128
      %431 = vsyncadd [#allocation3], %s430
      %s433 = sshll.u32 [#allocation2], 4
      %s434 = int_to_ptr.vmem [resolvable:$true] %s433
      %436 = dma.vmem_to_hbm [thread:$0]  %s434, 128, %s4, [#allocation3]
    $region21: #{feature_extractor.1} parent=1 // pred_fallthru
      _
    // Predicated region
    $region22: #{feature_extractor.1} parent=1 // pred_check
      _
    $region23: #{feature_extractor.1} parent=1 // pred_check_branch
      %438 = sbr.rel (0) target = $region25
    $region24: #{feature_extractor.1} parent=1 // pred_region
      %439 = dma.done [#allocation3], 128
    $region25: #{feature_extractor.1} parent=1 // pred_fallthru
      _
    %440 = vsyncpa [#allocation3], 1

</llo_original>
